<compile_context>
chip_gen: v7x
topology: tpu7x:2x2x1
jax: 0.10.0
libtpu: 0.0.40
codegen_flags: <defaults>
</compile_context>

<pallas_src>
import jax
import jax.numpy as jnp
from jax.experimental import pallas as pl
from jax.experimental.pallas import tpu as pltpu


def _normalize_kernel(mean_ref, inv_std_ref, x_ref, o_ref):
    # mean_ref / inv_std_ref: (R_blk, 1) per-row scalars (row = one (n, c) pair)
    # x_ref / o_ref:          (R_blk, T) lane-dense tile of the (N*C, H*W) view
    o_ref[...] = (x_ref[...] - mean_ref[...]) * inv_std_ref[...]


def _choose_tiles(R, HW, itemsize, target_bytes=2 * 1024 * 1024):
    """Pick an (8,128)-legal, lane-dense block of roughly `target_bytes`."""
    target_elems = max(1, target_bytes // itemsize)
    lane_cap = 65536  # multiple of 128
    # Lane (last) axis: full extent (always legal) or a 128-multiple cap.
    T = HW if HW <= lane_cap else lane_cap
    # Sublane (second-last) axis: full extent or a multiple of 8.
    rows_target = max(1, target_elems // T)
    if rows_target >= R:
        R_blk = R
    else:
        R_blk = max(8, (rows_target // 8) * 8)
    return R_blk, T


def normalize(x, mean, std):
    """(x - mean[None,:,None,None]) / std[None,:,None,None] for NCHW x."""
    N, C, H, W = x.shape
    HW = H * W
    R = N * C
    itemsize = jnp.dtype(x.dtype).itemsize

    # Free (contiguous) view: row = one (batch, channel) pair.
    x2 = x.reshape(R, HW)

    # Per-row scalars, computed once on the tiny (C,) params in the wrapper.
    # Divide -> multiply by a precomputed reciprocal (<= 1 ulp difference).
    mean_c = mean.astype(x.dtype)
    inv_std = (1.0 / std.astype(jnp.float32)).astype(x.dtype)
    mean_rows = jnp.broadcast_to(mean_c[None, :], (N, C)).reshape(R, 1)
    inv_rows = jnp.broadcast_to(inv_std[None, :], (N, C)).reshape(R, 1)

    R_blk, T = _choose_tiles(R, HW, itemsize)
    grid = (pl.cdiv(R, R_blk), pl.cdiv(HW, T))

    out2 = pl.pallas_call(
        _normalize_kernel,
        out_shape=jax.ShapeDtypeStruct((R, HW), x.dtype),
        grid=grid,
        in_specs=[
            pl.BlockSpec((R_blk, 1), lambda i, j: (i, 0)),  # mean per row
            pl.BlockSpec((R_blk, 1), lambda i, j: (i, 0)),  # 1/std per row
            pl.BlockSpec((R_blk, T), lambda i, j: (i, j)),  # x tile
        ],
        out_specs=pl.BlockSpec((R_blk, T), lambda i, j: (i, j)),
        compiler_params=pltpu.CompilerParams(
            dimension_semantics=("parallel", "parallel"),
        ),
        cost_estimate=pl.CostEstimate(
            flops=2 * N * C * H * W,
            transcendentals=0,
            bytes_accessed=2 * N * C * H * W * itemsize,
        ),
    )(mean_rows, inv_rows, x2)

    return out2.reshape(N, C, H, W)


if __name__ == "__main__":
    key = jax.random.PRNGKey(0)

    # Primary test: module-consistent small NCHW input.
    C = 4
    mean = jnp.array([0.485, 0.456, 0.406, 0.5], dtype=jnp.float32)
    std = jnp.array([0.229, 0.224, 0.225, 0.25], dtype=jnp.float32)
    x = jax.random.normal(key, (2, C, 16, 16), dtype=jnp.float32)

    out = jax.block_until_ready(normalize(x, mean, std))
    ref = (x - mean[None, :, None, None]) / std[None, :, None, None]
    assert out.shape == ref.shape and out.dtype == ref.dtype
    assert jnp.allclose(out, ref, atol=1e-5, rtol=1e-5)

    # Secondary sanity check on a non-128-aligned spatial shape.
    key2 = jax.random.PRNGKey(1)
    C2 = 3
    mean2 = jnp.array([0.485, 0.456, 0.406], dtype=jnp.float32)
    std2 = jnp.array([0.229, 0.224, 0.225], dtype=jnp.float32)
    x2 = jax.random.normal(key2, (2, C2, 17, 23), dtype=jnp.float32)
    out2 = jax.block_until_ready(normalize(x2, mean2, std2))
    ref2 = (x2 - mean2[None, :, None, None]) / std2[None, :, None, None]
    assert jnp.allclose(out2, ref2, atol=1e-5, rtol=1e-5)

    print("KERNEL_OK")
</pallas_src>

<mosaic_0001>
module attributes {stable_mosaic.version = 11 : i64} {
  func.func @_normalize_kernel(%arg0: i32, %arg1: i32, %arg2: memref<8x1xf32, #tpu.memory_space<vmem>>, %arg3: memref<8x1xf32, #tpu.memory_space<vmem>>, %arg4: memref<8x256xf32, #tpu.memory_space<vmem>>, %arg5: memref<8x256xf32, #tpu.memory_space<vmem>>) attributes {dimension_semantics = [#tpu.dimension_semantics<parallel>, #tpu.dimension_semantics<parallel>], iteration_bounds = array<i64: 1, 1>, scalar_prefetch = 0 : i64, scratch_operands = 0 : i64, tpu.core_type = #tpu.core_type<tc>, window_params = [{transform_indices = @transform_0, window_bounds = array<i64: 8, 1>}, {transform_indices = @transform_1, window_bounds = array<i64: 8, 1>}, {transform_indices = @transform_2, window_bounds = array<i64: 8, 256>}, {transform_indices = @transform_3, window_bounds = array<i64: 8, 256>}]} {
    %c0 = arith.constant 0 : index
    %c0_0 = arith.constant 0 : index
    %0 = vector.load %arg4[%c0, %c0_0] : memref<8x256xf32, #tpu.memory_space<vmem>>, vector<8x256xf32>
    %c0_1 = arith.constant 0 : index
    %c0_2 = arith.constant 0 : index
    %1 = vector.load %arg2[%c0_1, %c0_2] : memref<8x1xf32, #tpu.memory_space<vmem>>, vector<8x1xf32>
    %2 = vector.broadcast %1 : vector<8x1xf32> to vector<8x256xf32>
    %3 = arith.subf %0, %2 : vector<8x256xf32>
    %c0_3 = arith.constant 0 : index
    %c0_4 = arith.constant 0 : index
    %4 = vector.load %arg3[%c0_3, %c0_4] : memref<8x1xf32, #tpu.memory_space<vmem>>, vector<8x1xf32>
    %5 = vector.broadcast %4 : vector<8x1xf32> to vector<8x256xf32>
    %6 = arith.mulf %3, %5 : vector<8x256xf32>
    %c0_5 = arith.constant 0 : index
    %c0_6 = arith.constant 0 : index
    %7 = vector.load %arg5[%c0_5, %c0_6] : memref<8x256xf32, #tpu.memory_space<vmem>>, vector<8x256xf32>
    tpu.vector_store %arg5[%c0_5, %c0_6], %6 {strides = array<i32>} : memref<8x256xf32, #tpu.memory_space<vmem>>, vector<8x256xf32>,
    return
  }
  func.func @transform_0(%arg0: i32, %arg1: i32) -> (i32, i32) {
    %c0_i32 = arith.constant 0 : i32
    %c0_i32_0 = arith.constant 0 : i32
    return %arg0, %c0_i32 : i32, i32
  }
  func.func @transform_1(%arg0: i32, %arg1: i32) -> (i32, i32) {
    %c0_i32 = arith.constant 0 : i32
    %c0_i32_0 = arith.constant 0 : i32
    return %arg0, %c0_i32 : i32, i32
  }
  func.func @transform_2(%arg0: i32, %arg1: i32) -> (i32, i32) {
    %c0_i32 = arith.constant 0 : i32
    return %arg0, %arg1 : i32, i32
  }
  func.func @transform_3(%arg0: i32, %arg1: i32) -> (i32, i32) {
    %c0_i32 = arith.constant 0 : i32
    return %arg0, %arg1 : i32, i32
  }
}

</mosaic_0001>

<llo_original>
// kernel: tpu_custom_call.1
$region0: #{tpu_custom_call.1}
  #allocation0 [shape = 'u32[]', space=smem, size = 0x4, offset = 0x4, fixed_abs, tag = 'smem constant byte address 0x4 - core index']
  #allocation1 [shape = 'u32[144,128]{1,0:T(1,128)}', space=vmem, size = 0x12000, scoped, tag = 'internal scratch']
  %s0 = inlined_call_operand.vmem [shape: f32[8,1], index: 0, kind: input, shape index: {}]
  %s1 = inlined_call_operand.vmem [shape: f32[8,1], index: 1, kind: input, shape index: {}]
  %s2 = inlined_call_operand.vmem [shape: f32[8,256], index: 2, kind: input, shape index: {}]
  %s3 = inlined_call_operand.hbm [shape: f32[8,256], index: 3, kind: output, shape index: {}]
  %s4 = sld [smem:[#allocation0]]
  $region22: #{tpu_custom_call.1} parent=0
    _
  %s6 = ssub.s32 1, %s4
  %s7 = scalar_select 0, %s6, %s4
  $region1: #{tpu_custom_call.1} parent=0
    #allocation2 [shape = 'u8[8192]{0}', space=vmem, size = 0x2000, scoped, tag = 'output window, operand 0, single buffered']
    #allocation3 [shape = 's32[1]{0}', space=sflag, size = 0x4, scoped, tag = 'scoped memory for tpu_custom_call.1']
    %8 = vsyncpa [#allocation3], 0
    // Predicated region
    $region2: #{tpu_custom_call.1} parent=1 // pred_check
      _
    $region3: #{tpu_custom_call.1} parent=1 // pred_check_branch
      %10 = sbr.rel (0) target = $region5
    $region4: #{tpu_custom_call.1} parent=1 // pred_region
      _
    $region5: #{tpu_custom_call.1} parent=1 // pred_fallthru
      _
    // Predicated region
    $region6: #{tpu_custom_call.1} parent=1 // pred_check
      _
    $region7: #{tpu_custom_call.1} parent=1 // pred_check_branch
      %12 = sbr.rel (0) target = $region9
    $region8: #{tpu_custom_call.1} parent=1 // pred_region
      _
    $region9: #{tpu_custom_call.1} parent=1 // pred_fallthru
      _
    // Predicated region
    $region10: #{tpu_custom_call.1} parent=1 // pred_check
      _
    $region11: #{tpu_custom_call.1} parent=1 // pred_check_branch
      %14 = sbr.rel (0) target = $region13
    $region12: #{tpu_custom_call.1} parent=1 // pred_region
      _
    $region13: #{tpu_custom_call.1} parent=1 // pred_fallthru
      _
    %v15 = vld [vmem:[%s2] sm:$0xff]
    %v16 = vld [vmem:[%s2 + $0x8] sm:$0xff]
    %v17 = vld [vmem:[%s0] sm:$0xff]
    %19 = vset.pattern.permute.xlu0 0
    %20 = vperm.xlu0 %19, %v17
    %v21 = vpop.permute.xlu0 %20
    %v23 = vsub.f32 %v15, %v21
    %v24 = vsub.f32 %v16, %v21
    %v25 = vld [vmem:[%s1] sm:$0xff]
    %27 = vset.pattern.permute.xlu0 0
    %28 = vperm.xlu0 %27, %v25
    %v29 = vpop.permute.xlu0 %28
    %v31 = vmul.f32 %v23, %v29
    %v32 = vmul.f32 %v24, %v29
    %33 = vst [vmem:[#allocation2] sm:$0xff] %v31
    %34 = vst [vmem:[#allocation2 + $0x8] sm:$0xff] %v32
    // Predicated region
    $region14: #{tpu_custom_call.1} parent=1 // pred_check
      _
    $region15: #{tpu_custom_call.1} parent=1 // pred_check_branch
      %36 = sbr.rel (0) target = $region17
    $region16: #{tpu_custom_call.1} parent=1 // pred_region
      %s38 = ssub.s32 256, 256
      %39 = vsyncadd [#allocation3], %s38
      %s41 = sshll.u32 [#allocation2], 4
      %s42 = int_to_ptr.vmem [resolvable:$true] %s41
      %44 = dma.vmem_to_hbm [thread:$0]  %s42, 256, %s3, [#allocation3]
    $region17: #{tpu_custom_call.1} parent=1 // pred_fallthru
      _
    // Predicated region
    $region18: #{tpu_custom_call.1} parent=1 // pred_check
      _
    $region19: #{tpu_custom_call.1} parent=1 // pred_check_branch
      %46 = sbr.rel (0) target = $region21
    $region20: #{tpu_custom_call.1} parent=1 // pred_region
      %47 = dma.done [#allocation3], 256
    $region21: #{tpu_custom_call.1} parent=1 // pred_fallthru
      _
    %48 = vsyncpa [#allocation3], 1

</llo_original>
